<compile_context>
chip_gen: v6e
topology: v6e:2x2x1
jax: 0.10.0
libtpu: 0.0.40
codegen_flags: <defaults>
</compile_context>

<pallas_src>
import jax
import jax.numpy as jnp
from jax.experimental import pallas as pl
from jax.experimental.pallas import tpu as pltpu  # noqa: F401  (kept for TPU-specific tuning hooks)

# Problem sizes (small, consistent with the module's shapes).
N = 8          # batch
D_IN = 32      # input feature dim
M = 4          # number of codebooks
K = 16         # codes per codebook
DSUB = 8       # sub-vector dim per codebook
D_OUT = D_IN   # decoder reconstructs the input dim


def dpq_kernel(x_ref, wenc_ref, benc_ref, wscore_ref, bscore_ref,
               wdec_ref, bdec_ref, out_ref):
    """Single invocation (no grid): all M subspaces fused.

      h          = x @ W_enc + b_enc                          [N, M*DSUB]
      score      = h @ W_score + b_score                      [N, M*K]
                   (W_score is block-diag of 2*exp(-log_t[m])*C_m^T,
                    b_score is -exp(-log_t[m])*|C_m|^2; norm1 dropped since
                    it is constant per row inside each softmax)
      codes_m    = softmax_K(score[:, m*K:(m+1)*K])           (eval-mode GS)
      out        = concat_m(codes_m) @ W_dec + b_dec          [N, D_OUT]
    """
    x = x_ref[...]                                                   # [N, D_IN]

    # Encoder: one MXU matmul for all subspaces.
    h = jnp.dot(x, wenc_ref[...],
                preferred_element_type=jnp.float32) + benc_ref[...]  # [N, M*DSUB]

    # All subspace scores in one 32-wide-contraction matmul.
    score = jnp.dot(h, wscore_ref[...],
                    preferred_element_type=jnp.float32) + bscore_ref[...]  # [N, M*K]

    # TODO(synk): GumbelSoftmax noise / hard straight-through sampling omitted;
    # this is the deterministic eval-mode soft assignment (softmax over K).
    codes_parts = []
    for m in range(M):                       # M=4, fully unrolled at trace time
        s = score[:, m * K:(m + 1) * K]                              # [N, K]
        s = s - jnp.max(s, axis=-1, keepdims=True)
        p = jnp.exp(s)
        codes_parts.append(p / jnp.sum(p, axis=-1, keepdims=True))
    codes = jnp.concatenate(codes_parts, axis=-1)                    # [N, M*K]

    # Decoder: one 64-wide-contraction MXU matmul, bias added once.
    out_ref[...] = (jnp.dot(codes, wdec_ref[...],
                            preferred_element_type=jnp.float32)
                    + bdec_ref[...])                                 # [N, D_OUT]


def dpq_forward(x, w_enc, b_enc, codebook, log_t, w_dec, b_dec):
    """Host-side prep: fold temperature scale, factor 2, and -|C|^2 into a
    block-diagonal score matrix + bias so the kernel is pure matmul/softmax."""
    n = x.shape[0]
    scale = jnp.exp(-log_t)                                          # [M]

    # Block-diagonal [M*DSUB, M*K]; block m is 2*scale[m]*C_m^T ([DSUB, K]).
    blocks = 2.0 * scale[:, None, None] * jnp.transpose(codebook, (0, 2, 1))
    w_score = jnp.zeros((M * DSUB, M * K), jnp.float32)
    for m in range(M):
        w_score = w_score.at[m * DSUB:(m + 1) * DSUB,
                             m * K:(m + 1) * K].set(blocks[m])

    # Pre-scaled -|C_mk|^2 bias, flattened to the [1, M*K] score layout.
    b_score = (-scale[:, None] * jnp.sum(codebook ** 2, axis=-1)
               ).reshape(1, M * K).astype(jnp.float32)

    return pl.pallas_call(
        dpq_kernel,
        out_shape=jax.ShapeDtypeStruct((n, D_OUT), jnp.float32),
        # No grid: every operand is a few KB, so all arrays live whole in VMEM
        # for the single kernel invocation (no BlockSpec tiling needed).
    )(x,
      w_enc,
      b_enc.reshape(1, M * DSUB),
      w_score,
      b_score,
      w_dec,
      b_dec.reshape(1, D_OUT))


def dpq_reference(x, w_enc, b_enc, codebook, log_t, w_dec, b_dec):
    """Pure-JAX reference mirroring the PyTorch forward (eval-mode softmax)."""
    n = x.shape[0]
    h = (x @ w_enc + b_enc).reshape(n, M, DSUB)
    norm1 = jnp.sum(h ** 2, axis=-1, keepdims=True)                  # [N, M, 1]
    norm2 = jnp.sum(codebook ** 2, axis=-1)[None, :, :]              # [1, M, K]
    dot = jnp.einsum('nmd,mkd->nmk', h, codebook)                    # [N, M, K]
    score_raw = -norm1 + 2.0 * dot - norm2
    score = score_raw * jnp.exp(-log_t)[None, :, None]
    codes = jax.nn.softmax(score, axis=-1)
    return codes.reshape(n, M * K) @ w_dec + b_dec


if __name__ == "__main__":
    key = jax.random.PRNGKey(0)
    kx, ke, kbe, kc, kd, kbd = jax.random.split(key, 6)

    x = jax.random.normal(kx, (N, D_IN), dtype=jnp.float32)

    # Deterministic parameter init (synthetic; no checkpoint load).
    w_enc = jax.random.normal(ke, (D_IN, M * DSUB), jnp.float32) / jnp.sqrt(D_IN)
    b_enc = 0.1 * jax.random.normal(kbe, (M * DSUB,), jnp.float32)
    # nn.Parameter(torch.randn(M, K, dsub)).
    # TODO(synk): the data-dependent initialize() (codebook <- encoded samples)
    # is not reproduced; a deterministic random codebook is used instead.
    codebook = jax.random.normal(kc, (M, K, DSUB), jnp.float32)
    # initialize() sets log_temperatures to zeros on the first forward.
    log_t = jnp.zeros((M,), jnp.float32)
    w_dec = jax.random.normal(kd, (M * K, D_OUT), jnp.float32) / jnp.sqrt(M * K)
    b_dec = 0.1 * jax.random.normal(kbd, (D_OUT,), jnp.float32)

    out = dpq_forward(x, w_enc, b_enc, codebook, log_t, w_dec, b_dec)
    out = jax.block_until_ready(out)

    ref = dpq_reference(x, w_enc, b_enc, codebook, log_t, w_dec, b_dec)
    assert out.shape == (N, D_OUT), out.shape
    max_err = float(jnp.max(jnp.abs(out - ref)))
    assert jnp.allclose(out, ref, atol=1e-4, rtol=1e-4), max_err
    print("KERNEL_OK")
</pallas_src>

<mosaic_0001>
module attributes {stable_mosaic.version = 11 : i64} {
  func.func @dpq_kernel(%arg0: memref<8x32xf32, #tpu.memory_space<vmem>>, %arg1: memref<32x32xf32, #tpu.memory_space<vmem>>, %arg2: memref<1x32xf32, #tpu.memory_space<vmem>>, %arg3: memref<32x64xf32, #tpu.memory_space<vmem>>, %arg4: memref<1x64xf32, #tpu.memory_space<vmem>>, %arg5: memref<64x32xf32, #tpu.memory_space<vmem>>, %arg6: memref<1x32xf32, #tpu.memory_space<vmem>>, %arg7: memref<8x32xf32, #tpu.memory_space<vmem>>) attributes {dimension_semantics = [], scalar_prefetch = 0 : i64, scratch_operands = 0 : i64, tpu.core_type = #tpu.core_type<tc>} {
    %c0 = arith.constant 0 : index
    %c0_0 = arith.constant 0 : index
    %0 = vector.load %arg0[%c0, %c0_0] : memref<8x32xf32, #tpu.memory_space<vmem>>, vector<8x32xf32>
    %c0_1 = arith.constant 0 : index
    %c0_2 = arith.constant 0 : index
    %1 = vector.load %arg1[%c0_1, %c0_2] : memref<32x32xf32, #tpu.memory_space<vmem>>, vector<32x32xf32>
    %cst = arith.constant dense<0.000000e+00> : vector<8x32xf32>
    %2 = tpu.matmul %0, %1, %cst {dimension_numbers = #tpu.dot_dimension_numbers<[1], [0], [0], [1], [0, 0, 1, 1], [], []>} : vector<8x32xf32>, vector<32x32xf32>, vector<8x32xf32> -> vector<8x32xf32>
    %c0_3 = arith.constant 0 : index
    %c0_4 = arith.constant 0 : index
    %3 = vector.load %arg2[%c0_3, %c0_4] : memref<1x32xf32, #tpu.memory_space<vmem>>, vector<1x32xf32>
    %4 = vector.broadcast %3 : vector<1x32xf32> to vector<8x32xf32>
    %5 = arith.addf %2, %4 : vector<8x32xf32>
    %c0_5 = arith.constant 0 : index
    %c0_6 = arith.constant 0 : index
    %6 = vector.load %arg3[%c0_5, %c0_6] : memref<32x64xf32, #tpu.memory_space<vmem>>, vector<32x64xf32>
    %cst_7 = arith.constant dense<0.000000e+00> : vector<8x64xf32>
    %7 = tpu.matmul %5, %6, %cst_7 {dimension_numbers = #tpu.dot_dimension_numbers<[1], [0], [0], [1], [0, 0, 1, 1], [], []>} : vector<8x32xf32>, vector<32x64xf32>, vector<8x64xf32> -> vector<8x64xf32>
    %c0_8 = arith.constant 0 : index
    %c0_9 = arith.constant 0 : index
    %8 = vector.load %arg4[%c0_8, %c0_9] : memref<1x64xf32, #tpu.memory_space<vmem>>, vector<1x64xf32>
    %9 = vector.broadcast %8 : vector<1x64xf32> to vector<8x64xf32>
    %10 = arith.addf %7, %9 : vector<8x64xf32>
    %11 = vector.extract_strided_slice %10 {offsets = [0, 0], sizes = [8, 16], strides = [1, 1]} : vector<8x64xf32> to vector<8x16xf32>
    %cst_10 = arith.constant dense<0xFF800000> : vector<8xf32>
    %12 = vector.multi_reduction <maximumf>, %11, %cst_10 [1] : vector<8x16xf32> to vector<8xf32>
    %13 = vector.shape_cast %12 : vector<8xf32> to vector<8x1xf32>
    %14 = vector.broadcast %13 : vector<8x1xf32> to vector<8x16xf32>
    %15 = arith.subf %11, %14 : vector<8x16xf32>
    %16 = math.exp %15 : vector<8x16xf32>
    %cst_11 = arith.constant dense<0.000000e+00> : vector<8xf32>
    %17 = vector.multi_reduction <add>, %16, %cst_11 [1] : vector<8x16xf32> to vector<8xf32>
    %18 = vector.shape_cast %17 : vector<8xf32> to vector<8x1xf32>
    %19 = vector.broadcast %18 : vector<8x1xf32> to vector<8x16xf32>
    %20 = arith.divf %16, %19 : vector<8x16xf32>
    %21 = vector.extract_strided_slice %10 {offsets = [0, 16], sizes = [8, 16], strides = [1, 1]} : vector<8x64xf32> to vector<8x16xf32>
    %cst_12 = arith.constant dense<0xFF800000> : vector<8xf32>
    %22 = vector.multi_reduction <maximumf>, %21, %cst_12 [1] : vector<8x16xf32> to vector<8xf32>
    %23 = vector.shape_cast %22 : vector<8xf32> to vector<8x1xf32>
    %24 = vector.broadcast %23 : vector<8x1xf32> to vector<8x16xf32>
    %25 = arith.subf %21, %24 : vector<8x16xf32>
    %26 = math.exp %25 : vector<8x16xf32>
    %cst_13 = arith.constant dense<0.000000e+00> : vector<8xf32>
    %27 = vector.multi_reduction <add>, %26, %cst_13 [1] : vector<8x16xf32> to vector<8xf32>
    %28 = vector.shape_cast %27 : vector<8xf32> to vector<8x1xf32>
    %29 = vector.broadcast %28 : vector<8x1xf32> to vector<8x16xf32>
    %30 = arith.divf %26, %29 : vector<8x16xf32>
    %31 = vector.extract_strided_slice %10 {offsets = [0, 32], sizes = [8, 16], strides = [1, 1]} : vector<8x64xf32> to vector<8x16xf32>
    %cst_14 = arith.constant dense<0xFF800000> : vector<8xf32>
    %32 = vector.multi_reduction <maximumf>, %31, %cst_14 [1] : vector<8x16xf32> to vector<8xf32>
    %33 = vector.shape_cast %32 : vector<8xf32> to vector<8x1xf32>
    %34 = vector.broadcast %33 : vector<8x1xf32> to vector<8x16xf32>
    %35 = arith.subf %31, %34 : vector<8x16xf32>
    %36 = math.exp %35 : vector<8x16xf32>
    %cst_15 = arith.constant dense<0.000000e+00> : vector<8xf32>
    %37 = vector.multi_reduction <add>, %36, %cst_15 [1] : vector<8x16xf32> to vector<8xf32>
    %38 = vector.shape_cast %37 : vector<8xf32> to vector<8x1xf32>
    %39 = vector.broadcast %38 : vector<8x1xf32> to vector<8x16xf32>
    %40 = arith.divf %36, %39 : vector<8x16xf32>
    %41 = vector.extract_strided_slice %10 {offsets = [0, 48], sizes = [8, 16], strides = [1, 1]} : vector<8x64xf32> to vector<8x16xf32>
    %cst_16 = arith.constant dense<0xFF800000> : vector<8xf32>
    %42 = vector.multi_reduction <maximumf>, %41, %cst_16 [1] : vector<8x16xf32> to vector<8xf32>
    %43 = vector.shape_cast %42 : vector<8xf32> to vector<8x1xf32>
    %44 = vector.broadcast %43 : vector<8x1xf32> to vector<8x16xf32>
    %45 = arith.subf %41, %44 : vector<8x16xf32>
    %46 = math.exp %45 : vector<8x16xf32>
    %cst_17 = arith.constant dense<0.000000e+00> : vector<8xf32>
    %47 = vector.multi_reduction <add>, %46, %cst_17 [1] : vector<8x16xf32> to vector<8xf32>
    %48 = vector.shape_cast %47 : vector<8xf32> to vector<8x1xf32>
    %49 = vector.broadcast %48 : vector<8x1xf32> to vector<8x16xf32>
    %50 = arith.divf %46, %49 : vector<8x16xf32>
    %51 = tpu.concatenate %20, %30, %40, %50 in 1 : vector<8x16xf32>, vector<8x16xf32>, vector<8x16xf32>, vector<8x16xf32> -> vector<8x64xf32>
    %c0_18 = arith.constant 0 : index
    %c0_19 = arith.constant 0 : index
    %52 = vector.load %arg5[%c0_18, %c0_19] : memref<64x32xf32, #tpu.memory_space<vmem>>, vector<64x32xf32>
    %cst_20 = arith.constant dense<0.000000e+00> : vector<8x32xf32>
    %53 = tpu.matmul %51, %52, %cst_20 {dimension_numbers = #tpu.dot_dimension_numbers<[1], [0], [0], [1], [0, 0, 1, 1], [], []>} : vector<8x64xf32>, vector<64x32xf32>, vector<8x32xf32> -> vector<8x32xf32>
    %c0_21 = arith.constant 0 : index
    %c0_22 = arith.constant 0 : index
    %54 = vector.load %arg6[%c0_21, %c0_22] : memref<1x32xf32, #tpu.memory_space<vmem>>, vector<1x32xf32>
    %55 = vector.broadcast %54 : vector<1x32xf32> to vector<8x32xf32>
    %56 = arith.addf %53, %55 : vector<8x32xf32>
    %c0_23 = arith.constant 0 : index
    %c0_24 = arith.constant 0 : index
    %57 = vector.load %arg7[%c0_23, %c0_24] : memref<8x32xf32, #tpu.memory_space<vmem>>, vector<8x32xf32>
    tpu.vector_store %arg7[%c0_23, %c0_24], %56 {strides = array<i32>} : memref<8x32xf32, #tpu.memory_space<vmem>>, vector<8x32xf32>,
    return
  }
}

</mosaic_0001>

<llo_original>
// kernel: tpu_custom_call.1
$region0: #{tpu_custom_call.1}
  #allocation0 [shape = 'u32[]', space=smem, size = 0x4, offset = 0x4, fixed_abs, tag = 'smem constant byte address 0x4 - core index']
  #allocation1 [shape = 'u32[144,128]{1,0:T(1,128)}', space=vmem, size = 0x12000, scoped, tag = 'internal scratch']
  %s0 = inlined_call_operand.vmem [shape: f32[8,32], index: 0, kind: input, shape index: {}]
  %s1 = inlined_call_operand.vmem [shape: f32[32,32], index: 1, kind: input, shape index: {}]
  %s2 = inlined_call_operand.vmem [shape: f32[1,32], index: 2, kind: input, shape index: {}]
  %s3 = inlined_call_operand.vmem [shape: f32[32,64], index: 3, kind: input, shape index: {}]
  %s4 = inlined_call_operand.vmem [shape: f32[1,64], index: 4, kind: input, shape index: {}]
  %s5 = inlined_call_operand.vmem [shape: f32[64,32], index: 5, kind: input, shape index: {}]
  %s6 = inlined_call_operand.vmem [shape: f32[1,32], index: 6, kind: input, shape index: {}]
  %s7 = inlined_call_operand.hbm [shape: f32[8,32], index: 7, kind: output, shape index: {}]
  %s8 = sld [smem:[#allocation0]]
  $region38: #{tpu_custom_call.1} parent=0
    _
  %s10 = ssub.s32 1, %s8
  %s11 = scalar_select 0, %s10, %s8
  $region1: #{tpu_custom_call.1} parent=0
    #allocation2 [shape = 'u8[4096]{0}', space=vmem, size = 0x1000, scoped, tag = 'output window, operand 0, single buffered']
    #allocation3 [shape = 's32[1]{0}', space=sflag, size = 0x4, scoped, tag = 'scoped memory for tpu_custom_call.1']
    %12 = vsyncpa [#allocation3], 0
    // Predicated region
    $region2: #{tpu_custom_call.1} parent=1 // pred_check
      _
    $region3: #{tpu_custom_call.1} parent=1 // pred_check_branch
      %14 = sbr.rel (0) target = $region5
    $region4: #{tpu_custom_call.1} parent=1 // pred_region
      _
    $region5: #{tpu_custom_call.1} parent=1 // pred_fallthru
      _
    // Predicated region
    $region6: #{tpu_custom_call.1} parent=1 // pred_check
      _
    $region7: #{tpu_custom_call.1} parent=1 // pred_check_branch
      %16 = sbr.rel (0) target = $region9
    $region8: #{tpu_custom_call.1} parent=1 // pred_region
      _
    $region9: #{tpu_custom_call.1} parent=1 // pred_fallthru
      _
    // Predicated region
    $region10: #{tpu_custom_call.1} parent=1 // pred_check
      _
    $region11: #{tpu_custom_call.1} parent=1 // pred_check_branch
      %18 = sbr.rel (0) target = $region13
    $region12: #{tpu_custom_call.1} parent=1 // pred_region
      _
    $region13: #{tpu_custom_call.1} parent=1 // pred_fallthru
      _
    // Predicated region
    $region14: #{tpu_custom_call.1} parent=1 // pred_check
      _
    $region15: #{tpu_custom_call.1} parent=1 // pred_check_branch
      %20 = sbr.rel (0) target = $region17
    $region16: #{tpu_custom_call.1} parent=1 // pred_region
      _
    $region17: #{tpu_custom_call.1} parent=1 // pred_fallthru
      _
    // Predicated region
    $region18: #{tpu_custom_call.1} parent=1 // pred_check
      _
    $region19: #{tpu_custom_call.1} parent=1 // pred_check_branch
      %22 = sbr.rel (0) target = $region21
    $region20: #{tpu_custom_call.1} parent=1 // pred_region
      _
    $region21: #{tpu_custom_call.1} parent=1 // pred_fallthru
      _
    // Predicated region
    $region22: #{tpu_custom_call.1} parent=1 // pred_check
      _
    $region23: #{tpu_custom_call.1} parent=1 // pred_check_branch
      %24 = sbr.rel (0) target = $region25
    $region24: #{tpu_custom_call.1} parent=1 // pred_region
      _
    $region25: #{tpu_custom_call.1} parent=1 // pred_fallthru
      _
    // Predicated region
    $region26: #{tpu_custom_call.1} parent=1 // pred_check
      _
    $region27: #{tpu_custom_call.1} parent=1 // pred_check_branch
      %26 = sbr.rel (0) target = $region29
    $region28: #{tpu_custom_call.1} parent=1 // pred_region
      _
    $region29: #{tpu_custom_call.1} parent=1 // pred_fallthru
      _
    %v27 = vld [vmem:[%s0] sm:$0xff]
    %v28 = vld [vmem:[%s1] sm:$0xff]
    %v29 = vld [vmem:[%s1 + $0x8] sm:$0xff]
    %v30 = vld [vmem:[%s1 + $0x10] sm:$0xff]
    %v31 = vld [vmem:[%s1 + $0x18] sm:$0xff]
    %v32 = vld [vmem:[%s2] sm:$0x1]
    %v34 = vlaneseq
    %v35 = vshrl.u32 %v34, 7
    %v36 = vsub.s32 0, %v35
    %v37 = vrot.slane %v32, %v36
    %vm39 = vcmask 261120
    %v41 = vsel %vm39, %v27, 0
    %43 = vmatprep.subr.mxu0 0.0
    %44 = vmatpush1.msra.mxu0 0.0
    %45 = vmatprep.subr.mxu0 0.0
    %46 = vmatpush1.msra.mxu0 0.0
    %47 = vmatprep.subr.mxu0 0.0
    %48 = vmatpush1.msra.mxu0 0.0
    %49 = vmatprep.subr.mxu0 0.0
    %50 = vmatpush1.msra.mxu0 0.0
    %51 = vmatprep.subr.mxu0 0.0
    %52 = vmatpush1.msra.mxu0 0.0
    %53 = vmatprep.subr.mxu0 0.0
    %54 = vmatpush1.msra.mxu0 0.0
    %55 = vmatprep.subr.mxu0 0.0
    %56 = vmatpush1.msra.mxu0 0.0
    %57 = vmatprep.subr.mxu0 0.0
    %58 = vmatpush1.msra.mxu0 0.0
    %59 = vmatprep.subr.mxu0 0.0
    %60 = vmatpush1.msra.mxu0 0.0
    %61 = vmatprep.subr.mxu0 0.0
    %62 = vmatpush1.msra.mxu0 0.0
    %63 = vmatprep.subr.mxu0 0.0
    %64 = vmatpush1.msra.mxu0 0.0
    %65 = vmatprep.subr.mxu0 0.0
    %66 = vmatpush1.msra.mxu0 0.0
    %67 = vmatprep.subr.mxu0 0.0
    %68 = vmatpush1.msra.mxu0 %v31
    %69 = vmatprep.subr.mxu0 0.0
    %70 = vmatpush1.msra.mxu0 %v30
    %71 = vmatprep.subr.mxu0 0.0
    %72 = vmatpush1.msra.mxu0 %v29
    %73 = vmatprep.subr.mxu0 0.0
    %74 = vmatpush1.msra.mxu0 %v28
    %75 = vmatprep.subr.mxu0 0.0
    %76 = vmatpush2.msra.mxu0 0.0
    %77 = vmatprep.subr.mxu0 0.0
    %78 = vmatpush2.msra.mxu0 0.0
    %79 = vmatprep.subr.mxu0 0.0
    %80 = vmatpush2.msra.mxu0 0.0
    %81 = vmatprep.subr.mxu0 0.0
    %82 = vmatpush2.msra.mxu0 0.0
    %83 = vmatprep.subr.mxu0 0.0
    %84 = vmatpush2.msra.mxu0 0.0
    %85 = vmatprep.subr.mxu0 0.0
    %86 = vmatpush2.msra.mxu0 0.0
    %87 = vmatprep.subr.mxu0 0.0
    %88 = vmatpush2.msra.mxu0 0.0
    %89 = vmatprep.subr.mxu0 0.0
    %90 = vmatpush2.msra.mxu0 0.0
    %91 = vmatprep.subr.mxu0 0.0
    %92 = vmatpush2.msra.mxu0 0.0
    %93 = vmatprep.subr.mxu0 0.0
    %94 = vmatpush2.msra.mxu0 0.0
    %95 = vmatprep.subr.mxu0 0.0
    %96 = vmatpush2.msra.mxu0 0.0
    %97 = vmatprep.subr.mxu0 0.0
    %98 = vmatpush2.msra.mxu0 0.0
    %99 = vmatprep.subr.mxu0 0.0
    %100 = vmatpush2.msra.mxu0 0.0
    %101 = vmatprep.subr.mxu0 0.0
    %102 = vmatpush2.msra.mxu0 0.0
    %103 = vmatprep.subr.mxu0 0.0
    %104 = vmatpush2.msra.mxu0 0.0
    %105 = vmatprep.subr.mxu0 0.0
    %106 = vmatpush2.msra.mxu0 0.0
    %107 = vmatprep.mubr.f32.mxu0 0.0
    %108 = vmatmul.mubr.f32.gmra.mxu0 %v41
    %v109 = vpop.f32.mrf.mxu0
    %v110 = vadd.f32 %v37, %v109
    %v111 = vpop.f32.mrf.mxu0
    %112 = vdwg.mxu0
    %v113 = vld [vmem:[%s3] sm:$0xff]
    %v114 = vld [vmem:[%s3 + $0x8] sm:$0xff]
    %v115 = vld [vmem:[%s3 + $0x10] sm:$0xff]
    %v116 = vld [vmem:[%s3 + $0x18] sm:$0xff]
    %v117 = vld [vmem:[%s4] sm:$0x1]
    %v119 = vlaneseq
    %v120 = vshrl.u32 %v119, 7
    %v121 = vsub.s32 0, %v120
    %v122 = vrot.slane %v117, %v121
    %v125 = vsel %vm39, %v110, 0
    %127 = vmatprep.subr.mxu0 0.0
    %128 = vmatpush1.msra.mxu0 0.0
    %129 = vmatprep.subr.mxu0 0.0
    %130 = vmatpush1.msra.mxu0 0.0
    %131 = vmatprep.subr.mxu0 0.0
    %132 = vmatpush1.msra.mxu0 0.0
    %133 = vmatprep.subr.mxu0 0.0
    %134 = vmatpush1.msra.mxu0 0.0
    %135 = vmatprep.subr.mxu0 0.0
    %136 = vmatpush1.msra.mxu0 0.0
    %137 = vmatprep.subr.mxu0 0.0
    %138 = vmatpush1.msra.mxu0 0.0
    %139 = vmatprep.subr.mxu0 0.0
    %140 = vmatpush1.msra.mxu0 0.0
    %141 = vmatprep.subr.mxu0 0.0
    %142 = vmatpush1.msra.mxu0 0.0
    %143 = vmatprep.subr.mxu0 0.0
    %144 = vmatpush1.msra.mxu0 0.0
    %145 = vmatprep.subr.mxu0 0.0
    %146 = vmatpush1.msra.mxu0 0.0
    %147 = vmatprep.subr.mxu0 0.0
    %148 = vmatpush1.msra.mxu0 0.0
    %149 = vmatprep.subr.mxu0 0.0
    %150 = vmatpush1.msra.mxu0 0.0
    %151 = vmatprep.subr.mxu0 0.0
    %152 = vmatpush1.msra.mxu0 %v116
    %153 = vmatprep.subr.mxu0 0.0
    %154 = vmatpush1.msra.mxu0 %v115
    %155 = vmatprep.subr.mxu0 0.0
    %156 = vmatpush1.msra.mxu0 %v114
    %157 = vmatprep.subr.mxu0 0.0
    %158 = vmatpush1.msra.mxu0 %v113
    %159 = vmatprep.subr.mxu0 0.0
    %160 = vmatpush2.msra.mxu0 0.0
    %161 = vmatprep.subr.mxu0 0.0
    %162 = vmatpush2.msra.mxu0 0.0
    %163 = vmatprep.subr.mxu0 0.0
    %164 = vmatpush2.msra.mxu0 0.0
    %165 = vmatprep.subr.mxu0 0.0
    %166 = vmatpush2.msra.mxu0 0.0
    %167 = vmatprep.subr.mxu0 0.0
    %168 = vmatpush2.msra.mxu0 0.0
    %169 = vmatprep.subr.mxu0 0.0
    %170 = vmatpush2.msra.mxu0 0.0
    %171 = vmatprep.subr.mxu0 0.0
    %172 = vmatpush2.msra.mxu0 0.0
    %173 = vmatprep.subr.mxu0 0.0
    %174 = vmatpush2.msra.mxu0 0.0
    %175 = vmatprep.subr.mxu0 0.0
    %176 = vmatpush2.msra.mxu0 0.0
    %177 = vmatprep.subr.mxu0 0.0
    %178 = vmatpush2.msra.mxu0 0.0
    %179 = vmatprep.subr.mxu0 0.0
    %180 = vmatpush2.msra.mxu0 0.0
    %181 = vmatprep.subr.mxu0 0.0
    %182 = vmatpush2.msra.mxu0 0.0
    %183 = vmatprep.subr.mxu0 0.0
    %184 = vmatpush2.msra.mxu0 0.0
    %185 = vmatprep.subr.mxu0 0.0
    %186 = vmatpush2.msra.mxu0 0.0
    %187 = vmatprep.subr.mxu0 0.0
    %188 = vmatpush2.msra.mxu0 0.0
    %189 = vmatprep.subr.mxu0 0.0
    %190 = vmatpush2.msra.mxu0 0.0
    %191 = vmatprep.mubr.f32.mxu0 0.0
    %192 = vmatmul.mubr.f32.gmra.mxu0 %v125
    %v193 = vpop.f32.mrf.mxu0
    %v194 = vadd.f32 %v122, %v193
    %v195 = vpop.f32.mrf.mxu0
    %196 = vdwg.mxu0
    %vm197 = vcmask 130048
    %v198 = vsel %vm197, %v194, -inf
    %199 = vmax.xlane.f32.xlu0 %v198
    %v200 = vpop.xlane.xlu0 %199
    %v201 = vsub.f32 %v194, %v200
    %v202 = vmul.f32 %v201, 1.442695
    %v203 = vpow.pop %v202
    %v204 = vsel %vm197, %v203, 0.0
    %205 = vadd.xlane.f32.xlu0 %v204
    %v206 = vpop.xlane.xlu0 %205
    %v207 = vrcp.pop %v206
    %v208 = vmul.f32 %v203, %v207
    %vm209 = vcmask 261248
    %v210 = vsel %vm209, %v194, -inf
    %211 = vmax.xlane.f32.xlu0 %v210
    %v212 = vpop.xlane.xlu0 %211
    %v213 = vsub.f32 %v194, %v212
    %v214 = vmul.f32 %v213, 1.442695
    %v215 = vpow.pop %v214
    %217 = vrot.lane.b32.xlu0 %v215, 112
    %v218 = vpop.permute.xlu0 %217
    %v220 = vsel %vm197, %v218, 0.0
    %221 = vadd.xlane.f32.xlu0 %v220
    %v222 = vpop.xlane.xlu0 %221
    %v223 = vrcp.pop %v222
    %v224 = vmul.f32 %v215, %v223
    %vm225 = vcmask 392448
    %v226 = vsel %vm225, %v194, -inf
    %227 = vmax.xlane.f32.xlu0 %v226
    %v228 = vpop.xlane.xlu0 %227
    %v229 = vsub.f32 %v194, %v228
    %v230 = vmul.f32 %v229, 1.442695
    %v231 = vpow.pop %v230
    %233 = vrot.lane.b32.xlu0 %v231, 96
    %v234 = vpop.permute.xlu0 %233
    %v236 = vsel %vm197, %v234, 0.0
    %237 = vadd.xlane.f32.xlu0 %v236
    %v238 = vpop.xlane.xlu0 %237
    %v239 = vrcp.pop %v238
    %v240 = vmul.f32 %v231, %v239
    %vm241 = vcmask 523648
    %v242 = vsel %vm241, %v194, -inf
    %243 = vmax.xlane.f32.xlu0 %v242
    %v244 = vpop.xlane.xlu0 %243
    %v245 = vsub.f32 %v194, %v244
    %v246 = vmul.f32 %v245, 1.442695
    %v247 = vpow.pop %v246
    %249 = vrot.lane.b32.xlu0 %v247, 80
    %v250 = vpop.permute.xlu0 %249
    %v252 = vsel %vm197, %v250, 0.0
    %253 = vadd.xlane.f32.xlu0 %v252
    %v254 = vpop.xlane.xlu0 %253
    %v255 = vrcp.pop %v254
    %v256 = vmul.f32 %v247, %v255
    %v257 = vsel %vm197, %v208, %v224
    %v258 = vsel %vm39, %v257, %v240
    %vm259 = vcmask 392192
    %v260 = vsel %vm259, %v258, %v256
    %v261 = vld [vmem:[%s5] sm:$0xff]
    %v262 = vld [vmem:[%s5 + $0x8] sm:$0xff]
    %v263 = vld [vmem:[%s5 + $0x10] sm:$0xff]
    %v264 = vld [vmem:[%s5 + $0x18] sm:$0xff]
    %v265 = vld [vmem:[%s5 + $0x20] sm:$0xff]
    %v266 = vld [vmem:[%s5 + $0x28] sm:$0xff]
    %v267 = vld [vmem:[%s5 + $0x30] sm:$0xff]
    %v268 = vld [vmem:[%s5 + $0x38] sm:$0xff]
    %v269 = vld [vmem:[%s6] sm:$0x1]
    %v271 = vlaneseq
    %v272 = vshrl.u32 %v271, 7
    %v273 = vsub.s32 0, %v272
    %v274 = vrot.slane %v269, %v273
    %vm276 = vcmask 523264
    %v278 = vsel %vm276, %v260, 0
    %280 = vmatprep.subr.mxu0 0.0
    %281 = vmatpush1.msra.mxu0 0.0
    %282 = vmatprep.subr.mxu0 0.0
    %283 = vmatpush1.msra.mxu0 0.0
    %284 = vmatprep.subr.mxu0 0.0
    %285 = vmatpush1.msra.mxu0 0.0
    %286 = vmatprep.subr.mxu0 0.0
    %287 = vmatpush1.msra.mxu0 0.0
    %288 = vmatprep.subr.mxu0 0.0
    %289 = vmatpush1.msra.mxu0 0.0
    %290 = vmatprep.subr.mxu0 0.0
    %291 = vmatpush1.msra.mxu0 0.0
    %292 = vmatprep.subr.mxu0 0.0
    %293 = vmatpush1.msra.mxu0 0.0
    %294 = vmatprep.subr.mxu0 0.0
    %295 = vmatpush1.msra.mxu0 0.0
    %296 = vmatprep.subr.mxu0 0.0
    %297 = vmatpush1.msra.mxu0 %v268
    %298 = vmatprep.subr.mxu0 0.0
    %299 = vmatpush1.msra.mxu0 %v267
    %300 = vmatprep.subr.mxu0 0.0
    %301 = vmatpush1.msra.mxu0 %v266
    %302 = vmatprep.subr.mxu0 0.0
    %303 = vmatpush1.msra.mxu0 %v265
    %304 = vmatprep.subr.mxu0 0.0
    %305 = vmatpush1.msra.mxu0 %v264
    %306 = vmatprep.subr.mxu0 0.0
    %307 = vmatpush1.msra.mxu0 %v263
    %308 = vmatprep.subr.mxu0 0.0
    %309 = vmatpush1.msra.mxu0 %v262
    %310 = vmatprep.subr.mxu0 0.0
    %311 = vmatpush1.msra.mxu0 %v261
    %312 = vmatprep.subr.mxu0 0.0
    %313 = vmatpush2.msra.mxu0 0.0
    %314 = vmatprep.subr.mxu0 0.0
    %315 = vmatpush2.msra.mxu0 0.0
    %316 = vmatprep.subr.mxu0 0.0
    %317 = vmatpush2.msra.mxu0 0.0
    %318 = vmatprep.subr.mxu0 0.0
    %319 = vmatpush2.msra.mxu0 0.0
    %320 = vmatprep.subr.mxu0 0.0
    %321 = vmatpush2.msra.mxu0 0.0
    %322 = vmatprep.subr.mxu0 0.0
    %323 = vmatpush2.msra.mxu0 0.0
    %324 = vmatprep.subr.mxu0 0.0
    %325 = vmatpush2.msra.mxu0 0.0
    %326 = vmatprep.subr.mxu0 0.0
    %327 = vmatpush2.msra.mxu0 0.0
    %328 = vmatprep.subr.mxu0 0.0
    %329 = vmatpush2.msra.mxu0 0.0
    %330 = vmatprep.subr.mxu0 0.0
    %331 = vmatpush2.msra.mxu0 0.0
    %332 = vmatprep.subr.mxu0 0.0
    %333 = vmatpush2.msra.mxu0 0.0
    %334 = vmatprep.subr.mxu0 0.0
    %335 = vmatpush2.msra.mxu0 0.0
    %336 = vmatprep.subr.mxu0 0.0
    %337 = vmatpush2.msra.mxu0 0.0
    %338 = vmatprep.subr.mxu0 0.0
    %339 = vmatpush2.msra.mxu0 0.0
    %340 = vmatprep.subr.mxu0 0.0
    %341 = vmatpush2.msra.mxu0 0.0
    %342 = vmatprep.subr.mxu0 0.0
    %343 = vmatpush2.msra.mxu0 0.0
    %344 = vmatprep.mubr.f32.mxu0 0.0
    %345 = vmatmul.mubr.f32.gmra.mxu0 %v278
    %v346 = vpop.f32.mrf.mxu0
    %v347 = vadd.f32 %v274, %v346
    %v348 = vpop.f32.mrf.mxu0
    %349 = vdwg.mxu0
    %350 = vst.msk [vmem:[#allocation2] sm:$0xff] %vm39, %v347
    // Predicated region
    $region30: #{tpu_custom_call.1} parent=1 // pred_check
      _
    $region31: #{tpu_custom_call.1} parent=1 // pred_check_branch
      %352 = sbr.rel (0) target = $region33
    $region32: #{tpu_custom_call.1} parent=1 // pred_region
      %s354 = ssub.s32 128, 128
      %355 = vsyncadd [#allocation3], %s354
      %s357 = sshll.u32 [#allocation2], 4
      %s358 = int_to_ptr.vmem [resolvable:$true] %s357
      %360 = dma.vmem_to_hbm [thread:$0]  %s358, 128, %s7, [#allocation3]
    $region33: #{tpu_custom_call.1} parent=1 // pred_fallthru
      _
    // Predicated region
    $region34: #{tpu_custom_call.1} parent=1 // pred_check
      _
    $region35: #{tpu_custom_call.1} parent=1 // pred_check_branch
      %362 = sbr.rel (0) target = $region37
    $region36: #{tpu_custom_call.1} parent=1 // pred_region
      %363 = dma.done [#allocation3], 128
    $region37: #{tpu_custom_call.1} parent=1 // pred_fallthru
      _
    %364 = vsyncpa [#allocation3], 1

</llo_original>
